<compile_context>
chip_gen: v7x
topology: tpu7x:2x2x1
jax: 0.10.0
libtpu: 0.0.40
codegen_flags: <defaults>
</compile_context>

<pallas_src>
import functools
import math

import jax
import jax.numpy as jnp
from jax.experimental import pallas as pl
from jax.experimental.pallas import tpu as pltpu


_KEY = {'exit': 2.0, 'open': 0.0}


def _sensory_kernel(x_ref, o_ref, *, rigidity, hw):
    # x_ref: (TB, HW) in the caller's native dtype (e.g. int32 object codes).
    # o_ref: (TB, 2*HW) float32 -- channel 0 in lanes [0, HW), channel 1 in [HW, 2*HW).
    x = x_ref[...].astype(jnp.float32)          # cast on the VPU (mem-bound -> free)
    r = jnp.float32(rigidity)

    # channel 0 ("exit" detector):        z0 = r*x - 1.5*r
    # channel 1 ("open-or-exit" detector): z1 = z0 + 2*r
    z0 = r * x - jnp.float32(1.5 * rigidity)

    # Object codes are small non-negative integers, so exp(-z0) <= exp(1.5*r)
    # and cannot overflow in f32; one exp feeds both sigmoids (halves EUP work).
    e = jnp.exp(-z0)
    c = jnp.float32(math.exp(-2.0 * rigidity))  # exp(-(z1 - z0)), compile-time constant
    sig0 = 1.0 / (1.0 + e)
    sig1 = 1.0 / (1.0 + e * c)

    # Lane-dense, unmasked stores (static slices on the 128-lane axis).
    o_ref[:, :hw] = sig0
    o_ref[:, hw:] = sig1


def _reference(x, rigidity=5.0):
    """Pure-JAX reference mirroring the PyTorch forward (also the tiny-size path)."""
    w = jnp.full((2,), rigidity, dtype=jnp.float32)
    b = jnp.array(
        [-rigidity * (_KEY['exit'] - 0.5), -rigidity * (_KEY['open'] - 0.5)],
        dtype=jnp.float32,
    )
    xf = x.astype(jnp.float32)[:, None, :, :]                    # (B,1,n,n)
    z = xf * w[None, :, None, None] + b[None, :, None, None]     # (B,2,n,n)
    return jax.nn.sigmoid(z)


def sensory_net_fixed(x, rigidity=5.0, *, block_rows=None, force_pallas=False):
    """x: (B, n, n) array of object codes. Returns (B, 2, n, n) float32."""
    B, H, W = x.shape
    HW = H * W

    # For tiny inputs the custom-call / per-step overhead dominates: let XLA
    # fuse the affine+sigmoid.  The Pallas path is for large B*n*n.
    if not force_pallas and B * HW < (1 << 16):
        return _reference(x, rigidity)

    if block_rows is None:
        # ~1 MiB input block -> roughly 6 MiB of double-buffered VMEM including
        # the 2x-wide output block; comfortably under the scoped-VMEM default on
        # v5e (16 MiB) and v6e/v7x (32 MiB) while large enough to sit near the
        # HBM roofline.
        target_bytes = 1 << 20
        tb = max(1, target_bytes // (HW * 4))
        if tb < B:
            tb = max(8, (tb // 8) * 8)      # keep the sublane dim 8-aligned
        tb = min(tb, B)
    else:
        tb = min(block_rows, B)

    x_flat = x.reshape(B, HW)               # contiguous -> free; no dtype cast here

    kernel = functools.partial(_sensory_kernel, rigidity=float(rigidity), hw=HW)

    out_flat = pl.pallas_call(
        kernel,
        out_shape=jax.ShapeDtypeStruct((B, 2 * HW), jnp.float32),
        grid=(pl.cdiv(B, tb),),
        in_specs=[pl.BlockSpec((tb, HW), lambda i: (i, 0))],
        out_specs=pl.BlockSpec((tb, 2 * HW), lambda i: (i, 0)),
        compiler_params=pltpu.CompilerParams(
            dimension_semantics=("parallel",),   # shard blocks across 2 TCs on v7x
        ),
    )(x_flat)

    # (B, 2*HW) -> (B, 2, H, W) is a contiguous (free) reshape: channel 0 occupies
    # the first HW elements of each row, matching NCHW.
    return out_flat.reshape(B, 2, H, W)


if __name__ == "__main__":
    rng = jax.random.PRNGKey(0)
    k0, k1 = jax.random.split(rng)

    # Object codes: 0 = open, 1 = block, 2 = exit.
    B, n = 2, 16
    x_small = jax.random.randint(k0, (B, n, n), minval=0, maxval=3)   # int32 codes

    out = sensory_net_fixed(x_small, rigidity=5.0, force_pallas=True)
    out = jax.block_until_ready(out)
    ref = _reference(x_small, rigidity=5.0)
    assert out.shape == (B, 2, n, n)
    assert out.dtype == jnp.float32
    assert jnp.allclose(out, ref, atol=1e-5, rtol=1e-5)

    # Also exercise the multi-block tiled/pipelined grid path (4 grid steps).
    B2 = 32
    x_big = jax.random.randint(k1, (B2, n, n), minval=0, maxval=3)
    out2 = jax.block_until_ready(
        sensory_net_fixed(x_big, rigidity=5.0, block_rows=8, force_pallas=True))
    ref2 = _reference(x_big, rigidity=5.0)
    assert out2.shape == (B2, 2, n, n)
    assert jnp.allclose(out2, ref2, atol=1e-5, rtol=1e-5)

    print("KERNEL_OK")
</pallas_src>

<mosaic_0001>
module attributes {stable_mosaic.version = 11 : i64} {
  func.func @_sensory_kernel(%arg0: i32, %arg1: memref<2x256xi32, #tpu.memory_space<vmem>>, %arg2: memref<2x512xf32, #tpu.memory_space<vmem>>) attributes {dimension_semantics = [#tpu.dimension_semantics<parallel>], iteration_bounds = array<i64: 1>, scalar_prefetch = 0 : i64, scratch_operands = 0 : i64, tpu.core_type = #tpu.core_type<tc>, window_params = [{transform_indices = @transform_0, window_bounds = array<i64: 2, 256>}, {transform_indices = @transform_1, window_bounds = array<i64: 2, 512>}]} {
    %c0 = arith.constant 0 : index
    %c0_0 = arith.constant 0 : index
    %0 = vector.load %arg1[%c0, %c0_0] : memref<2x256xi32, #tpu.memory_space<vmem>>, vector<2x256xi32>
    %1 = arith.sitofp %0 : vector<2x256xi32> to vector<2x256xf32>
    %cst = arith.constant 5.000000e+00 : f32
    %2 = vector.broadcast %cst : f32 to vector<2x256xf32>
    %3 = arith.mulf %2, %1 : vector<2x256xf32>
    %cst_1 = arith.constant 7.500000e+00 : f32
    %4 = vector.broadcast %cst_1 : f32 to vector<2x256xf32>
    %5 = arith.subf %3, %4 : vector<2x256xf32>
    %cst_2 = arith.constant 0.000000e+00 : f32
    %6 = vector.broadcast %cst_2 : f32 to vector<2x256xf32>
    %7 = arith.subf %6, %5 : vector<2x256xf32>
    %8 = math.exp %7 : vector<2x256xf32>
    %cst_3 = arith.constant 1.000000e+00 : f32
    %9 = vector.broadcast %cst_3 : f32 to vector<2x256xf32>
    %10 = arith.addf %9, %8 : vector<2x256xf32>
    %cst_4 = arith.constant 1.000000e+00 : f32
    %11 = vector.broadcast %cst_4 : f32 to vector<2x256xf32>
    %12 = arith.divf %11, %10 : vector<2x256xf32>
    %cst_5 = arith.constant 4.5399931E-5 : f32
    %13 = vector.broadcast %cst_5 : f32 to vector<2x256xf32>
    %14 = arith.mulf %8, %13 : vector<2x256xf32>
    %cst_6 = arith.constant 1.000000e+00 : f32
    %15 = vector.broadcast %cst_6 : f32 to vector<2x256xf32>
    %16 = arith.addf %15, %14 : vector<2x256xf32>
    %cst_7 = arith.constant 1.000000e+00 : f32
    %17 = vector.broadcast %cst_7 : f32 to vector<2x256xf32>
    %18 = arith.divf %17, %16 : vector<2x256xf32>
    %c0_8 = arith.constant 0 : index
    %c0_9 = arith.constant 0 : index
    %19 = vector.load %arg2[%c0_8, %c0_9] : memref<2x512xf32, #tpu.memory_space<vmem>>, vector<2x256xf32>
    tpu.vector_store %arg2[%c0_8, %c0_9], %12 {strides = array<i32>} : memref<2x512xf32, #tpu.memory_space<vmem>>, vector<2x256xf32>,
    %c0_10 = arith.constant 0 : index
    %c256 = arith.constant 256 : index
    %20 = vector.load %arg2[%c0_10, %c256] : memref<2x512xf32, #tpu.memory_space<vmem>>, vector<2x256xf32>
    tpu.vector_store %arg2[%c0_10, %c256], %18 {strides = array<i32>} : memref<2x512xf32, #tpu.memory_space<vmem>>, vector<2x256xf32>,
    return
  }
  func.func @transform_0(%arg0: i32) -> (i32, i32) {
    %c0_i32 = arith.constant 0 : i32
    %c0_i32_0 = arith.constant 0 : i32
    return %arg0, %c0_i32 : i32, i32
  }
  func.func @transform_1(%arg0: i32) -> (i32, i32) {
    %c0_i32 = arith.constant 0 : i32
    %c0_i32_0 = arith.constant 0 : i32
    return %arg0, %c0_i32 : i32, i32
  }
}

</mosaic_0001>

<llo_original>
// kernel: tpu_custom_call.1
$region0: #{tpu_custom_call.1}
  #allocation0 [shape = 'u32[]', space=smem, size = 0x4, offset = 0x4, fixed_abs, tag = 'smem constant byte address 0x4 - core index']
  #allocation1 [shape = 'u32[144,128]{1,0:T(1,128)}', space=vmem, size = 0x12000, scoped, tag = 'internal scratch']
  %s0 = inlined_call_operand.hbm [shape: s32[2,256], index: 0, kind: input, shape index: {}]
  %s1 = inlined_call_operand.hbm [shape: f32[2,512], index: 1, kind: output, shape index: {}]
  %s2 = sld [smem:[#allocation0]]
  $region18: #{tpu_custom_call.1} parent=0
    _
  %s4 = ssub.s32 1, %s2
  %s5 = scalar_select 0, %s4, %s2
  $region1: #{tpu_custom_call.1} parent=0
    #allocation2 [shape = 'u8[2048]{0}', space=vmem, size = 0x800, scoped, tag = 'input window, operand 0, single buffered']
    #allocation3 [shape = 's32[1]{0}', space=sflag, size = 0x4, scoped, tag = 'scoped memory for tpu_custom_call.1']
    #allocation4 [shape = 's32[1]{0}', space=sflag, size = 0x4, scoped, tag = 'scoped memory for tpu_custom_call.1']
    #allocation5 [shape = 'u8[4096]{0}', space=vmem, size = 0x1000, scoped, tag = 'output window, operand 0, single buffered']
    %6 = vsyncpa [#allocation3], 0
    %7 = vsyncpa [#allocation4], 0
    // Predicated region
    $region2: #{tpu_custom_call.1} parent=1 // pred_check
      _
    $region3: #{tpu_custom_call.1} parent=1 // pred_check_branch
      %9 = sbr.rel (0) target = $region5
    $region4: #{tpu_custom_call.1} parent=1 // pred_region
      %s11 = ssub.s32 64, 64
      %12 = vsyncadd [#allocation3], %s11
      %s14 = sshll.u32 [#allocation2], 4
      %s15 = int_to_ptr.vmem [resolvable:$true] %s14
      %17 = dma.hbm_to_vmem [thread:$0]  %s0, 64, %s15, [#allocation3]
    $region5: #{tpu_custom_call.1} parent=1 // pred_fallthru
      _
    // Predicated region
    $region6: #{tpu_custom_call.1} parent=1 // pred_check
      _
    $region7: #{tpu_custom_call.1} parent=1 // pred_check_branch
      %19 = sbr.rel (0) target = $region9
    $region8: #{tpu_custom_call.1} parent=1 // pred_region
      %20 = dma.done [#allocation3], 64
    $region9: #{tpu_custom_call.1} parent=1 // pred_fallthru
      _
    %v21 = vld [vmem:[#allocation2] sm:$0xf]
    %v22 = vcvt.s32.f32 %v21
    %v23 = vmul.f32 %v22, 5.0
    %v24 = vsub.f32 %v23, 7.5
    %v25 = vsub.f32 0.0, %v24
    %v26 = vmul.f32 %v25, 1.442695
    %v27 = vpow.pop %v26
    %v28 = vadd.f32 %v27, 1.0
    %v29 = vrcp.pop %v28
    %v30 = vmul.f32 1.0, %v29
    %v31 = vmul.f32 %v27, 4.539993e-05
    %v32 = vadd.f32 %v31, 1.0
    %v33 = vrcp.pop %v32
    %v34 = vmul.f32 1.0, %v33
    %35 = vst [vmem:[#allocation5] sm:$0xf] %v30
    %36 = vst [vmem:[#allocation5 + $0x4] sm:$0xf] %v34
    // Predicated region
    $region10: #{tpu_custom_call.1} parent=1 // pred_check
      _
    $region11: #{tpu_custom_call.1} parent=1 // pred_check_branch
      %38 = sbr.rel (0) target = $region13
    $region12: #{tpu_custom_call.1} parent=1 // pred_region
      %s40 = ssub.s32 128, 128
      %41 = vsyncadd [#allocation4], %s40
      %s43 = sshll.u32 [#allocation5], 4
      %s44 = int_to_ptr.vmem [resolvable:$true] %s43
      %46 = dma.vmem_to_hbm [thread:$0]  %s44, 128, %s1, [#allocation4]
    $region13: #{tpu_custom_call.1} parent=1 // pred_fallthru
      _
    // Predicated region
    $region14: #{tpu_custom_call.1} parent=1 // pred_check
      _
    $region15: #{tpu_custom_call.1} parent=1 // pred_check_branch
      %48 = sbr.rel (0) target = $region17
    $region16: #{tpu_custom_call.1} parent=1 // pred_region
      %49 = dma.done [#allocation4], 128
    $region17: #{tpu_custom_call.1} parent=1 // pred_fallthru
      _
    %50 = vsyncpa [#allocation3], 1
    %51 = vsyncpa [#allocation4], 1

</llo_original>
